<compile_context>
chip_gen: v7x
topology: tpu7x:2x2x1
jax: 0.10.0
libtpu: 0.0.40
codegen_flags: <defaults>
</compile_context>

<pallas_src>
import functools
import math

import jax
import jax.numpy as jnp
from jax.experimental import pallas as pl
from jax.experimental.pallas import tpu as pltpu


_EXP_CLAMP = 85.0  # exp(85) ~ 8.2e36 < f32 max even after an 8-term group sum.


def _gating_kernel(x_ref, w_ref, b_ref, g_ref, o_ref, *, inv_group):
    """One row-tile of the packed gating network.

    x_ref: [TMS, PACK*D]     streamed input tile (caller's dtype)
    w_ref: [PACK*D, PACK*E]  block-diagonal W^T, bf16, VMEM resident
    b_ref: [1, PACK*E]       bias tiled PACK times, f32, resident
    g_ref: [PACK*E, PACK*E]  block-diagonal ones, bf16, resident
    o_ref: [TMS, PACK*E]     per-group softmax probabilities
    """
    # Single-pass bf16 MXU matmul with f32 accumulation.
    x = x_ref[...].astype(jnp.bfloat16)
    logits = jnp.dot(x, w_ref[...], preferred_element_type=jnp.float32)
    logits = logits + b_ref[...]

    # Per-group stabiliser: the group mean, broadcast to every lane of its
    # group by a tiny MXU matmul (MXU is otherwise idle in this mem-bound
    # kernel).  Shift-invariance keeps the softmax exact; group-mean shift
    # guarantees the group's max exponent is >= 0 (denominator >= 1), so no
    # underflow-to-zero / inf / NaN regardless of cross-row logit spread.
    group_sum = jnp.dot(logits.astype(jnp.bfloat16), g_ref[...],
                        preferred_element_type=jnp.float32)
    z = jnp.minimum(logits - group_sum * inv_group, _EXP_CLAMP)
    p = jnp.exp(z)

    # Per-group denominator broadcast back to each lane (second tiny matmul).
    # bf16 operands / f32 accumulation: 8-term sums of non-negative values,
    # error << the gating tolerance.
    denom = jnp.dot(p.astype(jnp.bfloat16), g_ref[...],
                    preferred_element_type=jnp.float32)

    # denom >= ~1 by construction.  Approximate EUP reciprocal keeps rows
    # normalised only to ~1e-3; switch to approx=False if a downstream
    # consumer needs tighter normalisation.
    o_ref[...] = (p * pl.reciprocal(denom, approx=True)).astype(o_ref.dtype)


def prepare_gating_params(weight, bias):
    """Build the packed constants once (hoist out of the per-call hot path).

    weight: [E, D] (PyTorch nn.Linear layout); bias: [E].
    """
    e, d = weight.shape
    # Lane packing factor: pack enough rows so the expert axis fills 128 lanes.
    # NOTE: if E does not divide 128 the kernel silently degrades to a
    # lane-sparse (pack == 1) layout - correct but much slower.
    pack = (128 // e) if (e <= 128 and 128 % e == 0) else 1
    lanes = pack * e

    w_t = weight.T.astype(jnp.bfloat16)                               # [D, E]
    w_big = jnp.kron(jnp.eye(pack, dtype=jnp.bfloat16), w_t)          # [P*D, P*E]
    b_big = jnp.tile(bias.astype(jnp.float32), pack).reshape(1, lanes)
    g_ones = jnp.kron(jnp.eye(pack, dtype=jnp.bfloat16),
                      jnp.ones((e, e), dtype=jnp.bfloat16))           # [P*E, P*E]
    return dict(pack=pack, lanes=lanes, num_experts=e, input_dim=d,
                w_big=w_big, b_big=b_big, g_ones=g_ones)


def _choose_tile_rows(r, in_row_bytes, out_row_bytes, const_bytes):
    """Pick the slab-row tile:
    - double-buffered (x + out) blocks plus resident constants stay well
      inside every generation's scoped VMEM (v7x: 32 MiB default / 64 MiB),
    - x blocks target ~2-4 MiB so the ~0.35us/step overhead is amortised,
    - >= 2 grid steps whenever the row count allows (megacore + pipelining).
    """
    if r <= 8:
        return r
    budget = max((24 << 20) - 2 * const_bytes, 4 << 20)
    per_row = 2 * (in_row_bytes + out_row_bytes)            # double-buffered
    tms = budget // per_row
    tms = min(tms, max(8, (4 << 20) // max(in_row_bytes, 1)))   # ~4 MiB blocks
    tms = min(tms, -(-r // 2))                               # >= 2 grid steps
    tms = max(8, (tms // 8) * 8)                             # sublane aligned
    return int(min(tms, r))


def _build_specs(tms, pack, d, lanes, single_buffer_consts):
    if single_buffer_consts:
        # Constant-index operands never change: a single buffer halves their
        # VMEM residency (matters at large D, harmless otherwise).
        def const_spec(shape):
            return pl.BlockSpec(shape, lambda i: (0, 0),
                                pipeline_mode=pl.Buffered(1))
    else:
        def const_spec(shape):
            return pl.BlockSpec(shape, lambda i: (0, 0))

    in_specs = [
        pl.BlockSpec((tms, pack * d), lambda i: (i, 0)),      # streamed x
        const_spec((pack * d, lanes)),                        # w_big (resident)
        const_spec((1, lanes)),                               # b_big (resident)
        const_spec((lanes, lanes)),                           # g_ones (resident)
    ]
    out_spec = pl.BlockSpec((tms, lanes), lambda i: (i, 0))
    return in_specs, out_spec


def _gating_packed(x2, params, out_dtype):
    """Main packed path.  x2: [m_main, D] with m_main % pack == 0, m_main > 0."""
    m_main, d = x2.shape
    pack, lanes, e = params["pack"], params["lanes"], params["num_experts"]
    r = m_main // pack
    xs = x2.reshape(r, pack * d)          # free row-major reinterpretation

    in_row_bytes = pack * d * x2.dtype.itemsize
    out_row_bytes = lanes * jnp.dtype(out_dtype).itemsize
    const_bytes = (params["w_big"].size * params["w_big"].dtype.itemsize
                   + params["g_ones"].size * params["g_ones"].dtype.itemsize
                   + params["b_big"].size * params["b_big"].dtype.itemsize)

    tms = _choose_tile_rows(r, in_row_bytes, out_row_bytes, const_bytes)
    grid = (pl.cdiv(r, tms),)
    need = 2 * tms * (in_row_bytes + out_row_bytes) + 2 * const_bytes + (2 << 20)
    vmem_limit = int(min(max(need, 32 << 20), 96 << 20))

    kern = functools.partial(_gating_kernel, inv_group=1.0 / e)

    def run(single_buffer_consts):
        in_specs, out_spec = _build_specs(tms, pack, d, lanes,
                                          single_buffer_consts)
        return pl.pallas_call(
            kern,
            out_shape=jax.ShapeDtypeStruct((r, lanes), out_dtype),
            grid_spec=pltpu.PrefetchScalarGridSpec(
                num_scalar_prefetch=0,
                grid=grid,
                in_specs=in_specs,
                out_specs=out_spec,
            ),
            compiler_params=pltpu.CompilerParams(
                dimension_semantics=("parallel",),   # shard rows across TCs
                vmem_limit_bytes=vmem_limit,
            ),
        )(xs, params["w_big"], params["b_big"], params["g_ones"])

    try:
        out = run(True)
    except Exception:
        # Fallback for JAX versions without BlockSpec pipeline_mode support.
        out = run(False)

    # Free reinterpretation back to [rows, E].
    return out.reshape(m_main, e)


def gating_network(x, weight, bias, params=None):
    """softmax(x @ weight.T + bias, axis=-1).  x: [..., D]; weight: [E, D]."""
    *lead, d = x.shape
    e = weight.shape[0]
    if params is None:
        # For repeated calls, build once with prepare_gating_params() and pass
        # params= so the packed constants stay out of the hot path.
        params = prepare_gating_params(weight, bias)

    out_dtype = x.dtype
    m = math.prod(lead) if lead else 1
    x2 = x.reshape(m, d)
    pack = params["pack"]
    m_main = (m // pack) * pack

    pieces = []
    if m_main > 0:
        x_main = x2 if m_main == m else x2[:m_main]
        pieces.append(_gating_packed(x_main, params, out_dtype))
    if m_main < m:
        # Tiny ragged tail (< pack rows): plain JAX; avoids materialising a
        # padded copy of the whole x in HBM for at most pack-1 rows.
        tail = x2[m_main:].astype(jnp.float32)
        logits = tail @ weight.T.astype(jnp.float32) + bias.astype(jnp.float32)
        pieces.append(jax.nn.softmax(logits, axis=-1).astype(out_dtype))

    out = pieces[0] if len(pieces) == 1 else jnp.concatenate(pieces, axis=0)
    return out.reshape(*lead, e)


if __name__ == "__main__":
    input_dim, num_experts = 32, 8
    key = jax.random.PRNGKey(0)
    kx1, kx2, kw, kb = jax.random.split(key, 4)

    # PyTorch nn.Linear shapes: W [E, D], b [E].
    bound = 1.0 / (input_dim ** 0.5)
    weight = jax.random.uniform(kw, (num_experts, input_dim),
                                minval=-bound, maxval=bound, dtype=jnp.float32)
    bias = jax.random.uniform(kb, (num_experts,),
                              minval=-bound, maxval=bound, dtype=jnp.float32)

    # Packed constants hoisted out of the per-call hot path.
    params = prepare_gating_params(weight, bias)

    def reference(x):
        return jax.nn.softmax(x @ weight.T + bias, axis=-1)

    # Tolerances account for the bf16 MXU operands and approx EUP reciprocal.
    # Case 1: small shapes consistent with the module (batch=2, seq=8, D=32).
    x1 = jax.random.normal(kx1, (2, 8, input_dim), dtype=jnp.float32)
    out1 = jax.block_until_ready(gating_network(x1, weight, bias, params=params))
    assert out1.shape == (2, 8, num_experts)
    assert jnp.allclose(out1, reference(x1), atol=5e-3, rtol=5e-3)
    assert jnp.allclose(jnp.sum(out1, axis=-1), 1.0, atol=1e-2)

    # Case 2: exercises a multi-step grid, a ragged final block and the
    # (< pack)-row plain-JAX tail path.
    x2 = jax.random.normal(kx2, (3, 70, input_dim), dtype=jnp.float32)
    out2 = jax.block_until_ready(gating_network(x2, weight, bias, params=params))
    assert out2.shape == (3, 70, num_experts)
    assert jnp.allclose(out2, reference(x2), atol=5e-3, rtol=5e-3)
    assert jnp.allclose(jnp.sum(out2, axis=-1), 1.0, atol=1e-2)

    print("KERNEL_OK")
</pallas_src>

<mosaic_0001>
module attributes {stable_mosaic.version = 11 : i64} {
  func.func @_gating_kernel(%arg0: i32, %arg1: memref<1x512xf32, #tpu.memory_space<vmem>>, %arg2: memref<512x128xbf16, #tpu.memory_space<vmem>>, %arg3: memref<1x128xf32, #tpu.memory_space<vmem>>, %arg4: memref<128x128xbf16, #tpu.memory_space<vmem>>, %arg5: memref<1x128xf32, #tpu.memory_space<vmem>>) attributes {dimension_semantics = [#tpu.dimension_semantics<parallel>], iteration_bounds = array<i64: 1>, scalar_prefetch = 0 : i64, scratch_operands = 0 : i64, tpu.core_type = #tpu.core_type<tc>, window_params = [{transform_indices = @transform_0, window_bounds = array<i64: 1, 512>}, {pipeline_mode = #tpu.pipeline_mode<synchronous>, transform_indices = @transform_1, window_bounds = array<i64: 512, 128>}, {pipeline_mode = #tpu.pipeline_mode<synchronous>, transform_indices = @transform_2, window_bounds = array<i64: 1, 128>}, {pipeline_mode = #tpu.pipeline_mode<synchronous>, transform_indices = @transform_3, window_bounds = array<i64: 128, 128>}, {transform_indices = @transform_4, window_bounds = array<i64: 1, 128>}]} {
    %c0 = arith.constant 0 : index
    %c0_0 = arith.constant 0 : index
    %0 = vector.load %arg1[%c0, %c0_0] : memref<1x512xf32, #tpu.memory_space<vmem>>, vector<1x512xf32>
    %1 = arith.truncf %0 : vector<1x512xf32> to vector<1x512xbf16>
    %c0_1 = arith.constant 0 : index
    %c0_2 = arith.constant 0 : index
    %2 = vector.load %arg2[%c0_1, %c0_2] : memref<512x128xbf16, #tpu.memory_space<vmem>>, vector<512x128xbf16>
    %cst = arith.constant dense<0.000000e+00> : vector<1x128xf32>
    %3 = tpu.matmul %1, %2, %cst {dimension_numbers = #tpu.dot_dimension_numbers<[1], [0], [0], [1], [0, 0, 1, 1], [], []>} : vector<1x512xbf16>, vector<512x128xbf16>, vector<1x128xf32> -> vector<1x128xf32>
    %c0_3 = arith.constant 0 : index
    %c0_4 = arith.constant 0 : index
    %4 = vector.load %arg3[%c0_3, %c0_4] : memref<1x128xf32, #tpu.memory_space<vmem>>, vector<1x128xf32>
    %5 = arith.addf %3, %4 : vector<1x128xf32>
    %6 = arith.truncf %5 : vector<1x128xf32> to vector<1x128xbf16>
    %c0_5 = arith.constant 0 : index
    %c0_6 = arith.constant 0 : index
    %7 = vector.load %arg4[%c0_5, %c0_6] : memref<128x128xbf16, #tpu.memory_space<vmem>>, vector<128x128xbf16>
    %cst_7 = arith.constant dense<0.000000e+00> : vector<1x128xf32>
    %8 = tpu.matmul %6, %7, %cst_7 {dimension_numbers = #tpu.dot_dimension_numbers<[1], [0], [0], [1], [0, 0, 1, 1], [], []>} : vector<1x128xbf16>, vector<128x128xbf16>, vector<1x128xf32> -> vector<1x128xf32>
    %cst_8 = arith.constant 1.250000e-01 : f32
    %9 = vector.broadcast %cst_8 : f32 to vector<1x128xf32>
    %10 = arith.mulf %8, %9 : vector<1x128xf32>
    %11 = arith.subf %5, %10 : vector<1x128xf32>
    %cst_9 = arith.constant 8.500000e+01 : f32
    %12 = vector.broadcast %cst_9 : f32 to vector<1x128xf32>
    %13 = arith.minimumf %11, %12 : vector<1x128xf32>
    %14 = math.exp %13 : vector<1x128xf32>
    %15 = arith.truncf %14 : vector<1x128xf32> to vector<1x128xbf16>
    %c0_10 = arith.constant 0 : index
    %c0_11 = arith.constant 0 : index
    %16 = vector.load %arg4[%c0_10, %c0_11] : memref<128x128xbf16, #tpu.memory_space<vmem>>, vector<128x128xbf16>
    %cst_12 = arith.constant dense<0.000000e+00> : vector<1x128xf32>
    %17 = tpu.matmul %15, %16, %cst_12 {dimension_numbers = #tpu.dot_dimension_numbers<[1], [0], [0], [1], [0, 0, 1, 1], [], []>} : vector<1x128xbf16>, vector<128x128xbf16>, vector<1x128xf32> -> vector<1x128xf32>
    %18 = tpu.reciprocal %17 {approx = true} : vector<1x128xf32> -> vector<1x128xf32>
    %19 = arith.mulf %14, %18 : vector<1x128xf32>
    %c0_13 = arith.constant 0 : index
    %c0_14 = arith.constant 0 : index
    %20 = vector.load %arg5[%c0_13, %c0_14] : memref<1x128xf32, #tpu.memory_space<vmem>>, vector<1x128xf32>
    tpu.vector_store %arg5[%c0_13, %c0_14], %19 {strides = array<i32>} : memref<1x128xf32, #tpu.memory_space<vmem>>, vector<1x128xf32>,
    return
  }
  func.func @transform_0(%arg0: i32) -> (i32, i32) {
    %c0_i32 = arith.constant 0 : i32
    %c0_i32_0 = arith.constant 0 : i32
    return %arg0, %c0_i32 : i32, i32
  }
  func.func @transform_1(%arg0: i32) -> (i32, i32) {
    %c0_i32 = arith.constant 0 : i32
    %c0_i32_0 = arith.constant 0 : i32
    %c0_i32_1 = arith.constant 0 : i32
    return %c0_i32, %c0_i32_0 : i32, i32
  }
  func.func @transform_2(%arg0: i32) -> (i32, i32) {
    %c0_i32 = arith.constant 0 : i32
    %c0_i32_0 = arith.constant 0 : i32
    %c0_i32_1 = arith.constant 0 : i32
    return %c0_i32, %c0_i32_0 : i32, i32
  }
  func.func @transform_3(%arg0: i32) -> (i32, i32) {
    %c0_i32 = arith.constant 0 : i32
    %c0_i32_0 = arith.constant 0 : i32
    %c0_i32_1 = arith.constant 0 : i32
    return %c0_i32, %c0_i32_0 : i32, i32
  }
  func.func @transform_4(%arg0: i32) -> (i32, i32) {
    %c0_i32 = arith.constant 0 : i32
    %c0_i32_0 = arith.constant 0 : i32
    return %arg0, %c0_i32 : i32, i32
  }
}

module attributes {stable_mosaic.version = 11 : i64} {
  func.func @_gating_kernel(%arg0: i32, %arg1: memref<1x512xf32, #tpu.memory_space<vmem>>, %arg2: memref<512x128xbf16, #tpu.memory_space<vmem>>, %arg3: memref<1x128xf32, #tpu.memory_space<vmem>>, %arg4: memref<128x128xbf16, #tpu.memory_space<vmem>>, %arg5: memref<1x128xf32, #tpu.memory_space<vmem>>) attributes {dimension_semantics = [#tpu.dimension_semantics<parallel>], iteration_bounds = array<i64: 1>, scalar_prefetch = 0 : i64, scratch_operands = 0 : i64, tpu.core_type = #tpu.core_type<tc>, window_params = [{transform_indices = @transform_0, window_bounds = array<i64: 1, 512>}, {pipeline_mode = #tpu.pipeline_mode<synchronous>, transform_indices = @transform_1, window_bounds = array<i64: 512, 128>}, {pipeline_mode = #tpu.pipeline_mode<synchronous>, transform_indices = @transform_2, window_bounds = array<i64: 1, 128>}, {pipeline_mode = #tpu.pipeline_mode<synchronous>, transform_indices = @transform_3, window_bounds = array<i64: 128, 128>}, {transform_indices = @transform_4, window_bounds = array<i64: 1, 128>}]} {
    %c0 = arith.constant 0 : index
    %c0_0 = arith.constant 0 : index
    %0 = vector.load %arg1[%c0, %c0_0] : memref<1x512xf32, #tpu.memory_space<vmem>>, vector<1x512xf32>
    %1 = arith.truncf %0 : vector<1x512xf32> to vector<1x512xbf16>
    %c0_1 = arith.constant 0 : index
    %c0_2 = arith.constant 0 : index
    %2 = vector.load %arg2[%c0_1, %c0_2] : memref<512x128xbf16, #tpu.memory_space<vmem>>, vector<512x128xbf16>
    %cst = arith.constant dense<0.000000e+00> : vector<1x128xf32>
    %3 = tpu.matmul %1, %2, %cst {dimension_numbers = #tpu.dot_dimension_numbers<[1], [0], [0], [1], [0, 0, 1, 1], [], []>} : vector<1x512xbf16>, vector<512x128xbf16>, vector<1x128xf32> -> vector<1x128xf32>
    %c0_3 = arith.constant 0 : index
    %c0_4 = arith.constant 0 : index
    %4 = vector.load %arg3[%c0_3, %c0_4] : memref<1x128xf32, #tpu.memory_space<vmem>>, vector<1x128xf32>
    %5 = arith.addf %3, %4 : vector<1x128xf32>
    %6 = arith.truncf %5 : vector<1x128xf32> to vector<1x128xbf16>
    %c0_5 = arith.constant 0 : index
    %c0_6 = arith.constant 0 : index
    %7 = vector.load %arg4[%c0_5, %c0_6] : memref<128x128xbf16, #tpu.memory_space<vmem>>, vector<128x128xbf16>
    %cst_7 = arith.constant dense<0.000000e+00> : vector<1x128xf32>
    %8 = tpu.matmul %6, %7, %cst_7 {dimension_numbers = #tpu.dot_dimension_numbers<[1], [0], [0], [1], [0, 0, 1, 1], [], []>} : vector<1x128xbf16>, vector<128x128xbf16>, vector<1x128xf32> -> vector<1x128xf32>
    %cst_8 = arith.constant 1.250000e-01 : f32
    %9 = vector.broadcast %cst_8 : f32 to vector<1x128xf32>
    %10 = arith.mulf %8, %9 : vector<1x128xf32>
    %11 = arith.subf %5, %10 : vector<1x128xf32>
    %cst_9 = arith.constant 8.500000e+01 : f32
    %12 = vector.broadcast %cst_9 : f32 to vector<1x128xf32>
    %13 = arith.minimumf %11, %12 : vector<1x128xf32>
    %14 = math.exp %13 : vector<1x128xf32>
    %15 = arith.truncf %14 : vector<1x128xf32> to vector<1x128xbf16>
    %c0_10 = arith.constant 0 : index
    %c0_11 = arith.constant 0 : index
    %16 = vector.load %arg4[%c0_10, %c0_11] : memref<128x128xbf16, #tpu.memory_space<vmem>>, vector<128x128xbf16>
    %cst_12 = arith.constant dense<0.000000e+00> : vector<1x128xf32>
    %17 = tpu.matmul %15, %16, %cst_12 {dimension_numbers = #tpu.dot_dimension_numbers<[1], [0], [0], [1], [0, 0, 1, 1], [], []>} : vector<1x128xbf16>, vector<128x128xbf16>, vector<1x128xf32> -> vector<1x128xf32>
    %18 = tpu.reciprocal %17 {approx = true} : vector<1x128xf32> -> vector<1x128xf32>
    %19 = arith.mulf %14, %18 : vector<1x128xf32>
    %c0_13 = arith.constant 0 : index
    %c0_14 = arith.constant 0 : index
    %20 = vector.load %arg5[%c0_13, %c0_14] : memref<1x128xf32, #tpu.memory_space<vmem>>, vector<1x128xf32>
    tpu.vector_store %arg5[%c0_13, %c0_14], %19 {strides = array<i32>} : memref<1x128xf32, #tpu.memory_space<vmem>>, vector<1x128xf32>,
    return
  }
  func.func @transform_0(%arg0: i32) -> (i32, i32) {
    %c0_i32 = arith.constant 0 : i32
    %c0_i32_0 = arith.constant 0 : i32
    return %arg0, %c0_i32 : i32, i32
  }
  func.func @transform_1(%arg0: i32) -> (i32, i32) {
    %c0_i32 = arith.constant 0 : i32
    %c0_i32_0 = arith.constant 0 : i32
    %c0_i32_1 = arith.constant 0 : i32
    return %c0_i32, %c0_i32_0 : i32, i32
  }
  func.func @transform_2(%arg0: i32) -> (i32, i32) {
    %c0_i32 = arith.constant 0 : i32
    %c0_i32_0 = arith.constant 0 : i32
    %c0_i32_1 = arith.constant 0 : i32
    return %c0_i32, %c0_i32_0 : i32, i32
  }
  func.func @transform_3(%arg0: i32) -> (i32, i32) {
    %c0_i32 = arith.constant 0 : i32
    %c0_i32_0 = arith.constant 0 : i32
    %c0_i32_1 = arith.constant 0 : i32
    return %c0_i32, %c0_i32_0 : i32, i32
  }
  func.func @transform_4(%arg0: i32) -> (i32, i32) {
    %c0_i32 = arith.constant 0 : i32
    %c0_i32_0 = arith.constant 0 : i32
    return %arg0, %c0_i32 : i32, i32
  }
}

</mosaic_0001>

<llo_original>
// kernel: tpu_custom_call.1
$region0: #{tpu_custom_call.1}
  #allocation0 [shape = 'u32[]', space=smem, size = 0x4, offset = 0x4, fixed_abs, tag = 'smem constant byte address 0x4 - core index']
  #allocation1 [shape = 'u32[144,128]{1,0:T(1,128)}', space=vmem, size = 0x12000, scoped, tag = 'internal scratch']
  %s0 = inlined_call_operand.hbm [shape: f32[1,512], index: 0, kind: input, shape index: {}]
  %s1 = inlined_call_operand.hbm [shape: bf16[512,128], index: 1, kind: input, shape index: {}]
  %s2 = inlined_call_operand.vmem [shape: f32[1,128], index: 2, kind: input, shape index: {}]
  %s3 = inlined_call_operand.hbm [shape: bf16[128,128], index: 3, kind: input, shape index: {}]
  %s4 = inlined_call_operand.hbm [shape: f32[1,128], index: 4, kind: output, shape index: {}]
  %s5 = sld [smem:[#allocation0]]
  $region38: #{tpu_custom_call.1} parent=0
    _
  %s7 = ssub.s32 1, %s5
  %s8 = scalar_select 0, %s7, %s5
  $region1: #{tpu_custom_call.1} parent=0
    #allocation2 [shape = 'u8[2048]{0}', space=vmem, size = 0x800, scoped, tag = 'input window, operand 0, single buffered']
    #allocation3 [shape = 's32[1]{0}', space=sflag, size = 0x4, scoped, tag = 'scoped memory for tpu_custom_call.1']
    #allocation4 [shape = 's32[1]{0}', space=sflag, size = 0x4, scoped, tag = 'scoped memory for tpu_custom_call.1']
    #allocation5 [shape = 'u8[131072]{0}', space=vmem, size = 0x20000, scoped, tag = 'input window, operand 1, single buffered']
    #allocation6 [shape = 's32[1]{0}', space=sflag, size = 0x4, scoped, tag = 'scoped memory for tpu_custom_call.1']
    #allocation7 [shape = 'u8[32768]{0}', space=vmem, size = 0x8000, scoped, tag = 'input window, operand 3, single buffered']
    #allocation8 [shape = 'u8[512]{0}', space=vmem, size = 0x400, scoped, tag = 'output window, operand 0, single buffered']
    %9 = vsyncpa [#allocation3], 0
    %10 = vsyncpa [#allocation6], 0
    %11 = vsyncpa [#allocation4], 0
    // Predicated region
    $region2: #{tpu_custom_call.1} parent=1 // pred_check
      _
    $region3: #{tpu_custom_call.1} parent=1 // pred_check_branch
      %13 = sbr.rel (0) target = $region5
    $region4: #{tpu_custom_call.1} parent=1 // pred_region
      %s15 = ssub.s32 64, 64
      %16 = vsyncadd [#allocation3], %s15
      %s18 = sshll.u32 [#allocation2], 4
      %s19 = int_to_ptr.vmem [resolvable:$true] %s18
      %21 = dma.hbm_to_vmem [thread:$0]  %s0, 64, %s19, [#allocation3]
    $region5: #{tpu_custom_call.1} parent=1 // pred_fallthru
      _
    // Predicated region
    $region6: #{tpu_custom_call.1} parent=1 // pred_check
      _
    $region7: #{tpu_custom_call.1} parent=1 // pred_check_branch
      %23 = sbr.rel (0) target = $region9
    $region8: #{tpu_custom_call.1} parent=1 // pred_region
      %s25 = ssub.s32 4096, 4096
      %26 = vsyncadd [#allocation6], %s25
      %s27 = sshll.u32 [#allocation5], 4
      %s28 = int_to_ptr.vmem [resolvable:$true] %s27
      %33 = dma.hbm_to_vmem [thread:$0]  %s1, 4096, %s28, [#allocation6], 64, 64, 4
    $region9: #{tpu_custom_call.1} parent=1 // pred_fallthru
      _
    // Predicated region
    $region10: #{tpu_custom_call.1} parent=1 // pred_check
      _
    $region11: #{tpu_custom_call.1} parent=1 // pred_check_branch
      %35 = sbr.rel (0) target = $region13
    $region12: #{tpu_custom_call.1} parent=1 // pred_region
      _
    $region13: #{tpu_custom_call.1} parent=1 // pred_fallthru
      _
    // Predicated region
    $region14: #{tpu_custom_call.1} parent=1 // pred_check
      _
    $region15: #{tpu_custom_call.1} parent=1 // pred_check_branch
      %37 = sbr.rel (0) target = $region17
    $region16: #{tpu_custom_call.1} parent=1 // pred_region
      %s39 = ssub.s32 1024, 1024
      %40 = vsyncadd [#allocation6], %s39
      %s41 = sshll.u32 [#allocation7], 4
      %s42 = int_to_ptr.vmem [resolvable:$true] %s41
      %47 = dma.hbm_to_vmem [thread:$0]  %s3, 1024, %s42, [#allocation6], 64, 64, 4
    $region17: #{tpu_custom_call.1} parent=1 // pred_fallthru
      _
    // Predicated region
    $region18: #{tpu_custom_call.1} parent=1 // pred_check
      _
    $region19: #{tpu_custom_call.1} parent=1 // pred_check_branch
      %49 = sbr.rel (0) target = $region21
    $region20: #{tpu_custom_call.1} parent=1 // pred_region
      %50 = dma.done [#allocation3], 64
    $region21: #{tpu_custom_call.1} parent=1 // pred_fallthru
      _
    // Predicated region
    $region22: #{tpu_custom_call.1} parent=1 // pred_check
      _
    $region23: #{tpu_custom_call.1} parent=1 // pred_check_branch
      %52 = sbr.rel (0) target = $region25
    $region24: #{tpu_custom_call.1} parent=1 // pred_region
      %53 = dma.done [#allocation6], 4096
    $region25: #{tpu_custom_call.1} parent=1 // pred_fallthru
      _
    // Predicated region
    $region26: #{tpu_custom_call.1} parent=1 // pred_check
      _
    $region27: #{tpu_custom_call.1} parent=1 // pred_check_branch
      %55 = sbr.rel (0) target = $region29
    $region28: #{tpu_custom_call.1} parent=1 // pred_region
      %56 = dma.done [#allocation6], 1024
    $region29: #{tpu_custom_call.1} parent=1 // pred_fallthru
      _
    %v58 = vld [vmem:[#allocation2] sm:$0xf]
    %v60 = vlaneseq
    %v61 = vshrl.u32 %v60, 7
    %v62 = vsub.s32 0, %v61
    %v63 = vrot.slane %v58, %v62
    %v64 = vlaneseq
    %v65 = vshrl.u32 %v64, 7
    %v66 = vsub.s32 1, %v65
    %v67 = vrot.slane %v58, %v66
    %v68 = vlaneseq
    %v69 = vshrl.u32 %v68, 7
    %v70 = vsub.s32 2, %v69
    %v71 = vrot.slane %v58, %v70
    %v72 = vlaneseq
    %v73 = vshrl.u32 %v72, 7
    %v74 = vsub.s32 3, %v73
    %v75 = vrot.slane %v58, %v74
    %v80 = vpack.c.bf16 %v63, %v63
    %v81 = vpack.c.bf16 %v67, %v67
    %v82 = vpack.c.bf16 %v71, %v71
    %v83 = vpack.c.bf16 %v75, %v75
    %v84 = vld [vmem:[#allocation5] sm:$0xf]
    %v85 = vld [vmem:[#allocation5 + $0x4] sm:$0xf]
    %v86 = vld [vmem:[#allocation5 + $0x8] sm:$0xf]
    %v87 = vld [vmem:[#allocation5 + $0xc] sm:$0xf]
    %v88 = vld [vmem:[#allocation5 + $0x10] sm:$0xf]
    %v89 = vld [vmem:[#allocation5 + $0x14] sm:$0xf]
    %v90 = vld [vmem:[#allocation5 + $0x18] sm:$0xf]
    %v91 = vld [vmem:[#allocation5 + $0x1c] sm:$0xf]
    %v92 = vld [vmem:[#allocation5 + $0x20] sm:$0xf]
    %v93 = vld [vmem:[#allocation5 + $0x24] sm:$0xf]
    %v94 = vld [vmem:[#allocation5 + $0x28] sm:$0xf]
    %v95 = vld [vmem:[#allocation5 + $0x2c] sm:$0xf]
    %v96 = vld [vmem:[#allocation5 + $0x30] sm:$0xf]
    %v97 = vld [vmem:[#allocation5 + $0x34] sm:$0xf]
    %v98 = vld [vmem:[#allocation5 + $0x38] sm:$0xf]
    %v99 = vld [vmem:[#allocation5 + $0x3c] sm:$0xf]
    %v100 = vld [vmem:[#allocation5 + $0x40] sm:$0xf]
    %v101 = vld [vmem:[#allocation5 + $0x44] sm:$0xf]
    %v102 = vld [vmem:[#allocation5 + $0x48] sm:$0xf]
    %v103 = vld [vmem:[#allocation5 + $0x4c] sm:$0xf]
    %v104 = vld [vmem:[#allocation5 + $0x50] sm:$0xf]
    %v105 = vld [vmem:[#allocation5 + $0x54] sm:$0xf]
    %v106 = vld [vmem:[#allocation5 + $0x58] sm:$0xf]
    %v107 = vld [vmem:[#allocation5 + $0x5c] sm:$0xf]
    %v108 = vld [vmem:[#allocation5 + $0x60] sm:$0xf]
    %v109 = vld [vmem:[#allocation5 + $0x64] sm:$0xf]
    %v110 = vld [vmem:[#allocation5 + $0x68] sm:$0xf]
    %v111 = vld [vmem:[#allocation5 + $0x6c] sm:$0xf]
    %v112 = vld [vmem:[#allocation5 + $0x70] sm:$0xf]
    %v113 = vld [vmem:[#allocation5 + $0x74] sm:$0xf]
    %v114 = vld [vmem:[#allocation5 + $0x78] sm:$0xf]
    %v115 = vld [vmem:[#allocation5 + $0x7c] sm:$0xf]
    %v116 = vld [vmem:[#allocation5 + $0x80] sm:$0xf]
    %v117 = vld [vmem:[#allocation5 + $0x84] sm:$0xf]
    %v118 = vld [vmem:[#allocation5 + $0x88] sm:$0xf]
    %v119 = vld [vmem:[#allocation5 + $0x8c] sm:$0xf]
    %v120 = vld [vmem:[#allocation5 + $0x90] sm:$0xf]
    %v121 = vld [vmem:[#allocation5 + $0x94] sm:$0xf]
    %v122 = vld [vmem:[#allocation5 + $0x98] sm:$0xf]
    %v123 = vld [vmem:[#allocation5 + $0x9c] sm:$0xf]
    %v124 = vld [vmem:[#allocation5 + $0xa0] sm:$0xf]
    %v125 = vld [vmem:[#allocation5 + $0xa4] sm:$0xf]
    %v126 = vld [vmem:[#allocation5 + $0xa8] sm:$0xf]
    %v127 = vld [vmem:[#allocation5 + $0xac] sm:$0xf]
    %v128 = vld [vmem:[#allocation5 + $0xb0] sm:$0xf]
    %v129 = vld [vmem:[#allocation5 + $0xb4] sm:$0xf]
    %v130 = vld [vmem:[#allocation5 + $0xb8] sm:$0xf]
    %v131 = vld [vmem:[#allocation5 + $0xbc] sm:$0xf]
    %v132 = vld [vmem:[#allocation5 + $0xc0] sm:$0xf]
    %v133 = vld [vmem:[#allocation5 + $0xc4] sm:$0xf]
    %v134 = vld [vmem:[#allocation5 + $0xc8] sm:$0xf]
    %v135 = vld [vmem:[#allocation5 + $0xcc] sm:$0xf]
    %v136 = vld [vmem:[#allocation5 + $0xd0] sm:$0xf]
    %v137 = vld [vmem:[#allocation5 + $0xd4] sm:$0xf]
    %v138 = vld [vmem:[#allocation5 + $0xd8] sm:$0xf]
    %v139 = vld [vmem:[#allocation5 + $0xdc] sm:$0xf]
    %v140 = vld [vmem:[#allocation5 + $0xe0] sm:$0xf]
    %v141 = vld [vmem:[#allocation5 + $0xe4] sm:$0xf]
    %v142 = vld [vmem:[#allocation5 + $0xe8] sm:$0xf]
    %v143 = vld [vmem:[#allocation5 + $0xec] sm:$0xf]
    %v144 = vld [vmem:[#allocation5 + $0xf0] sm:$0xf]
    %v145 = vld [vmem:[#allocation5 + $0xf4] sm:$0xf]
    %v146 = vld [vmem:[#allocation5 + $0xf8] sm:$0xf]
    %v147 = vld [vmem:[#allocation5 + $0xfc] sm:$0xf]
    %v148 = vld [vmem:[%s2] sm:$0x1]
    %v213 = vunpack.c.l.b16 %v84
    %v214 = vunpack.c.l.b16 %v85
    %v215 = vunpack.c.l.b16 %v86
    %v216 = vunpack.c.l.b16 %v87
    %v217 = vunpack.c.l.b16 %v88
    %v218 = vunpack.c.l.b16 %v89
    %v219 = vunpack.c.l.b16 %v90
    %v220 = vunpack.c.l.b16 %v91
    %v221 = vunpack.c.l.b16 %v92
    %v222 = vunpack.c.l.b16 %v93
    %v223 = vunpack.c.l.b16 %v94
    %v224 = vunpack.c.l.b16 %v95
    %v225 = vunpack.c.l.b16 %v96
    %v226 = vunpack.c.l.b16 %v97
    %v227 = vunpack.c.l.b16 %v98
    %v228 = vunpack.c.l.b16 %v99
    %v229 = vunpack.c.l.b16 %v100
    %v230 = vunpack.c.l.b16 %v101
    %v231 = vunpack.c.l.b16 %v102
    %v232 = vunpack.c.l.b16 %v103
    %v233 = vunpack.c.l.b16 %v104
    %v234 = vunpack.c.l.b16 %v105
    %v235 = vunpack.c.l.b16 %v106
    %v236 = vunpack.c.l.b16 %v107
    %v237 = vunpack.c.l.b16 %v108
    %v238 = vunpack.c.l.b16 %v109
    %v239 = vunpack.c.l.b16 %v110
    %v240 = vunpack.c.l.b16 %v111
    %v241 = vunpack.c.l.b16 %v112
    %v242 = vunpack.c.l.b16 %v113
    %v243 = vunpack.c.l.b16 %v114
    %v244 = vunpack.c.l.b16 %v115
    %v245 = vunpack.c.l.b16 %v116
    %v246 = vunpack.c.l.b16 %v117
    %v247 = vunpack.c.l.b16 %v118
    %v248 = vunpack.c.l.b16 %v119
    %v249 = vunpack.c.l.b16 %v120
    %v250 = vunpack.c.l.b16 %v121
    %v251 = vunpack.c.l.b16 %v122
    %v252 = vunpack.c.l.b16 %v123
    %v253 = vunpack.c.l.b16 %v124
    %v254 = vunpack.c.l.b16 %v125
    %v255 = vunpack.c.l.b16 %v126
    %v256 = vunpack.c.l.b16 %v127
    %v257 = vunpack.c.l.b16 %v128
    %v258 = vunpack.c.l.b16 %v129
    %v259 = vunpack.c.l.b16 %v130
    %v260 = vunpack.c.l.b16 %v131
    %v261 = vunpack.c.l.b16 %v132
    %v262 = vunpack.c.l.b16 %v133
    %v263 = vunpack.c.l.b16 %v134
    %v264 = vunpack.c.l.b16 %v135
    %v265 = vunpack.c.l.b16 %v136
    %v266 = vunpack.c.l.b16 %v137
    %v267 = vunpack.c.l.b16 %v138
    %v268 = vunpack.c.l.b16 %v139
    %v269 = vunpack.c.l.b16 %v140
    %v270 = vunpack.c.l.b16 %v141
    %v271 = vunpack.c.l.b16 %v142
    %v272 = vunpack.c.l.b16 %v143
    %v273 = vunpack.c.l.b16 %v144
    %v274 = vunpack.c.l.b16 %v145
    %v275 = vunpack.c.l.b16 %v146
    %v276 = vunpack.c.l.b16 %v147
    %v277 = vpack.c.b16 %v214, %v213
    %v278 = vpack.c.b16 %v216, %v215
    %v279 = vpack.c.b16 %v218, %v217
    %v280 = vpack.c.b16 %v220, %v219
    %v281 = vpack.c.b16 %v222, %v221
    %v282 = vpack.c.b16 %v224, %v223
    %v283 = vpack.c.b16 %v226, %v225
    %v284 = vpack.c.b16 %v228, %v227
    %v285 = vpack.c.b16 %v230, %v229
    %v286 = vpack.c.b16 %v232, %v231
    %v287 = vpack.c.b16 %v234, %v233
    %v288 = vpack.c.b16 %v236, %v235
    %v289 = vpack.c.b16 %v238, %v237
    %v290 = vpack.c.b16 %v240, %v239
    %v291 = vpack.c.b16 %v242, %v241
    %v292 = vpack.c.b16 %v244, %v243
    %v293 = vpack.c.b16 %v246, %v245
    %v294 = vpack.c.b16 %v248, %v247
    %v295 = vpack.c.b16 %v250, %v249
    %v296 = vpack.c.b16 %v252, %v251
    %v297 = vpack.c.b16 %v254, %v253
    %v298 = vpack.c.b16 %v256, %v255
    %v299 = vpack.c.b16 %v258, %v257
    %v300 = vpack.c.b16 %v260, %v259
    %v301 = vpack.c.b16 %v262, %v261
    %v302 = vpack.c.b16 %v264, %v263
    %v303 = vpack.c.b16 %v266, %v265
    %v304 = vpack.c.b16 %v268, %v267
    %v305 = vpack.c.b16 %v270, %v269
    %v306 = vpack.c.b16 %v272, %v271
    %v307 = vpack.c.b16 %v274, %v273
    %v308 = vpack.c.b16 %v276, %v275
    %341 = vmatprep.subr.bf16.mxu0 0
    %342 = vmatpush1.bf16.msra.mxu0 %v277
    %343 = vmatprep.subr.bf16.mxu0 0
    %344 = vmatpush1.bf16.msra.mxu0 %v278
    %345 = vmatprep.subr.bf16.mxu0 0
    %346 = vmatpush1.bf16.msra.mxu0 %v279
    %347 = vmatprep.subr.bf16.mxu0 0
    %348 = vmatpush1.bf16.msra.mxu0 %v280
    %349 = vmatprep.subr.bf16.mxu0 0
    %350 = vmatpush1.bf16.msra.mxu0 %v281
    %351 = vmatprep.subr.bf16.mxu0 0
    %352 = vmatpush1.bf16.msra.mxu0 %v282
    %353 = vmatprep.subr.bf16.mxu0 0
    %354 = vmatpush1.bf16.msra.mxu0 %v283
    %355 = vmatprep.subr.bf16.mxu0 0
    %356 = vmatpush1.bf16.msra.mxu0 %v284
    %357 = vmatprep.subr.bf16.mxu0 0
    %358 = vmatpush1.bf16.msra.mxu0 %v285
    %359 = vmatprep.subr.bf16.mxu0 0
    %360 = vmatpush1.bf16.msra.mxu0 %v286
    %361 = vmatprep.subr.bf16.mxu0 0
    %362 = vmatpush1.bf16.msra.mxu0 %v287
    %363 = vmatprep.subr.bf16.mxu0 0
    %364 = vmatpush1.bf16.msra.mxu0 %v288
    %365 = vmatprep.subr.bf16.mxu0 0
    %366 = vmatpush1.bf16.msra.mxu0 %v289
    %367 = vmatprep.subr.bf16.mxu0 0
    %368 = vmatpush1.bf16.msra.mxu0 %v290
    %369 = vmatprep.subr.bf16.mxu0 0
    %370 = vmatpush1.bf16.msra.mxu0 %v291
    %371 = vmatprep.subr.bf16.mxu0 0
    %372 = vmatpush1.bf16.msra.mxu0 %v292
    %373 = vmatprep.mubr.bf16.mxu0 %v81
    %374 = vmatmul.mubr.bf16.gmra.mrb[0].mxu0 %v80
    %v375 = vpop.f32.mrb[0].mxu0
    %v376 = vadd.f32 %v148, %v375
    %v377 = vpop.f32.mrb[0].mxu0
    %v378 = vpop.f32.mrb[0].mxu0
    %v379 = vpop.f32.mrb[0].mxu0
    %380 = vdwg.mxu0
    %381 = vmatprep.subr.bf16.mxu0 0
    %382 = vmatpush1.bf16.msra.mxu0 %v293
    %383 = vmatprep.subr.bf16.mxu0 0
    %384 = vmatpush1.bf16.msra.mxu0 %v294
    %385 = vmatprep.subr.bf16.mxu0 0
    %386 = vmatpush1.bf16.msra.mxu0 %v295
    %387 = vmatprep.subr.bf16.mxu0 0
    %388 = vmatpush1.bf16.msra.mxu0 %v296
    %389 = vmatprep.subr.bf16.mxu0 0
    %390 = vmatpush1.bf16.msra.mxu0 %v297
    %391 = vmatprep.subr.bf16.mxu0 0
    %392 = vmatpush1.bf16.msra.mxu0 %v298
    %393 = vmatprep.subr.bf16.mxu0 0
    %394 = vmatpush1.bf16.msra.mxu0 %v299
    %395 = vmatprep.subr.bf16.mxu0 0
    %396 = vmatpush1.bf16.msra.mxu0 %v300
    %397 = vmatprep.subr.bf16.mxu0 0
    %398 = vmatpush1.bf16.msra.mxu0 %v301
    %399 = vmatprep.subr.bf16.mxu0 0
    %400 = vmatpush1.bf16.msra.mxu0 %v302
    %401 = vmatprep.subr.bf16.mxu0 0
    %402 = vmatpush1.bf16.msra.mxu0 %v303
    %403 = vmatprep.subr.bf16.mxu0 0
    %404 = vmatpush1.bf16.msra.mxu0 %v304
    %405 = vmatprep.subr.bf16.mxu0 0
    %406 = vmatpush1.bf16.msra.mxu0 %v305
    %407 = vmatprep.subr.bf16.mxu0 0
    %408 = vmatpush1.bf16.msra.mxu0 %v306
    %409 = vmatprep.subr.bf16.mxu0 0
    %410 = vmatpush1.bf16.msra.mxu0 %v307
    %411 = vmatprep.subr.bf16.mxu0 0
    %412 = vmatpush1.bf16.msra.mxu0 %v308
    %413 = vmatprep.mubr.bf16.mxu0 %v83
    %414 = vmatmul.mubr.bf16.gmra.mrb[0].mxu0 %v82
    %v415 = vpop.f32.mrb[0].mxu0
    %v416 = vadd.f32 %v376, %v415
    %v417 = vpop.f32.mrb[0].mxu0
    %v418 = vpop.f32.mrb[0].mxu0
    %v419 = vpop.f32.mrb[0].mxu0
    %420 = vdwg.mxu0
    %v421 = vpack.c.bf16 %v416, %v416
    %v422 = vld [vmem:[#allocation7] sm:$0xf]
    %v423 = vld [vmem:[#allocation7 + $0x4] sm:$0xf]
    %v424 = vld [vmem:[#allocation7 + $0x8] sm:$0xf]
    %v425 = vld [vmem:[#allocation7 + $0xc] sm:$0xf]
    %v426 = vld [vmem:[#allocation7 + $0x10] sm:$0xf]
    %v427 = vld [vmem:[#allocation7 + $0x14] sm:$0xf]
    %v428 = vld [vmem:[#allocation7 + $0x18] sm:$0xf]
    %v429 = vld [vmem:[#allocation7 + $0x1c] sm:$0xf]
    %v430 = vld [vmem:[#allocation7 + $0x20] sm:$0xf]
    %v431 = vld [vmem:[#allocation7 + $0x24] sm:$0xf]
    %v432 = vld [vmem:[#allocation7 + $0x28] sm:$0xf]
    %v433 = vld [vmem:[#allocation7 + $0x2c] sm:$0xf]
    %v434 = vld [vmem:[#allocation7 + $0x30] sm:$0xf]
    %v435 = vld [vmem:[#allocation7 + $0x34] sm:$0xf]
    %v436 = vld [vmem:[#allocation7 + $0x38] sm:$0xf]
    %v437 = vld [vmem:[#allocation7 + $0x3c] sm:$0xf]
    %v454 = vunpack.c.l.b16 %v422
    %v455 = vunpack.c.l.b16 %v423
    %v456 = vunpack.c.l.b16 %v424
    %v457 = vunpack.c.l.b16 %v425
    %v458 = vunpack.c.l.b16 %v426
    %v459 = vunpack.c.l.b16 %v427
    %v460 = vunpack.c.l.b16 %v428
    %v461 = vunpack.c.l.b16 %v429
    %v462 = vunpack.c.l.b16 %v430
    %v463 = vunpack.c.l.b16 %v431
    %v464 = vunpack.c.l.b16 %v432
    %v465 = vunpack.c.l.b16 %v433
    %v466 = vunpack.c.l.b16 %v434
    %v467 = vunpack.c.l.b16 %v435
    %v468 = vunpack.c.l.b16 %v436
    %v469 = vunpack.c.l.b16 %v437
    %v470 = vpack.c.b16 %v455, %v454
    %v471 = vpack.c.b16 %v457, %v456
    %v472 = vpack.c.b16 %v459, %v458
    %v473 = vpack.c.b16 %v461, %v460
    %v474 = vpack.c.b16 %v463, %v462
    %v475 = vpack.c.b16 %v465, %v464
    %v476 = vpack.c.b16 %v467, %v466
    %v477 = vpack.c.b16 %v469, %v468
    %486 = vmatprep.subr.bf16.mxu0 0
    %487 = vmatpush1.bf16.msra.mxu0 %v470
    %488 = vmatprep.subr.bf16.mxu0 0
    %489 = vmatpush1.bf16.msra.mxu0 %v471
    %490 = vmatprep.subr.bf16.mxu0 0
    %491 = vmatpush1.bf16.msra.mxu0 %v472
    %492 = vmatprep.subr.bf16.mxu0 0
    %493 = vmatpush1.bf16.msra.mxu0 %v473
    %494 = vmatprep.subr.bf16.mxu0 0
    %495 = vmatpush1.bf16.msra.mxu0 %v474
    %496 = vmatprep.subr.bf16.mxu0 0
    %497 = vmatpush1.bf16.msra.mxu0 %v475
    %498 = vmatprep.subr.bf16.mxu0 0
    %499 = vmatpush1.bf16.msra.mxu0 %v476
    %500 = vmatprep.subr.bf16.mxu0 0
    %501 = vmatpush1.bf16.msra.mxu0 %v477
    %502 = vmatprep.subr.bf16.mxu0 0
    %503 = vmatpush1.bf16.msra.mxu0 0
    %504 = vmatprep.subr.bf16.mxu0 0
    %505 = vmatpush1.bf16.msra.mxu0 0
    %506 = vmatprep.subr.bf16.mxu0 0
    %507 = vmatpush1.bf16.msra.mxu0 0
    %508 = vmatprep.subr.bf16.mxu0 0
    %509 = vmatpush1.bf16.msra.mxu0 0
    %510 = vmatprep.subr.bf16.mxu0 0
    %511 = vmatpush1.bf16.msra.mxu0 0
    %512 = vmatprep.subr.bf16.mxu0 0
    %513 = vmatpush1.bf16.msra.mxu0 0
    %514 = vmatprep.subr.bf16.mxu0 0
    %515 = vmatpush1.bf16.msra.mxu0 0
    %516 = vmatprep.subr.bf16.mxu0 0
    %517 = vmatpush1.bf16.msra.mxu0 0
    %518 = vmatprep.mubr.bf16.mxu0 0
    %519 = vmatmul.mubr.bf16.gmra.mrb[0].mxu0 %v421
    %v520 = vpop.f32.mrb[0].mxu0
    %v521 = vadd.f32 0.0, %v520
    %v522 = vpop.f32.mrb[0].mxu0
    %v523 = vpop.f32.mrb[0].mxu0
    %v524 = vpop.f32.mrb[0].mxu0
    %525 = vdwg.mxu0
    %v526 = vmul.f32 %v521, 0.125
    %v527 = vsub.f32 %v416, %v526
    %v528 = vmin.f32 %v527, 85.0
    %v529 = vmul.f32 %v528, 1.442695
    %v530 = vpow.pop %v529
    %v531 = vpack.c.bf16 %v530, %v530
    %532 = vmatprep.subr.bf16.mxu0 0
    %533 = vmatpush1.bf16.msra.mxu0 %v470
    %534 = vmatprep.subr.bf16.mxu0 0
    %535 = vmatpush1.bf16.msra.mxu0 %v471
    %536 = vmatprep.subr.bf16.mxu0 0
    %537 = vmatpush1.bf16.msra.mxu0 %v472
    %538 = vmatprep.subr.bf16.mxu0 0
    %539 = vmatpush1.bf16.msra.mxu0 %v473
    %540 = vmatprep.subr.bf16.mxu0 0
    %541 = vmatpush1.bf16.msra.mxu0 %v474
    %542 = vmatprep.subr.bf16.mxu0 0
    %543 = vmatpush1.bf16.msra.mxu0 %v475
    %544 = vmatprep.subr.bf16.mxu0 0
    %545 = vmatpush1.bf16.msra.mxu0 %v476
    %546 = vmatprep.subr.bf16.mxu0 0
    %547 = vmatpush1.bf16.msra.mxu0 %v477
    %548 = vmatprep.subr.bf16.mxu0 0
    %549 = vmatpush1.bf16.msra.mxu0 0
    %550 = vmatprep.subr.bf16.mxu0 0
    %551 = vmatpush1.bf16.msra.mxu0 0
    %552 = vmatprep.subr.bf16.mxu0 0
    %553 = vmatpush1.bf16.msra.mxu0 0
    %554 = vmatprep.subr.bf16.mxu0 0
    %555 = vmatpush1.bf16.msra.mxu0 0
    %556 = vmatprep.subr.bf16.mxu0 0
    %557 = vmatpush1.bf16.msra.mxu0 0
    %558 = vmatprep.subr.bf16.mxu0 0
    %559 = vmatpush1.bf16.msra.mxu0 0
    %560 = vmatprep.subr.bf16.mxu0 0
    %561 = vmatpush1.bf16.msra.mxu0 0
    %562 = vmatprep.subr.bf16.mxu0 0
    %563 = vmatpush1.bf16.msra.mxu0 0
    %564 = vmatprep.mubr.bf16.mxu0 0
    %565 = vmatmul.mubr.bf16.gmra.mrb[0].mxu0 %v531
    %v566 = vpop.f32.mrb[0].mxu0
    %v567 = vadd.f32 0.0, %v566
    %v568 = vpop.f32.mrb[0].mxu0
    %v569 = vpop.f32.mrb[0].mxu0
    %v570 = vpop.f32.mrb[0].mxu0
    %571 = vdwg.mxu0
    %v572 = vrcp.pop %v567
    %v573 = vmul.f32 %v530, %v572
    %574 = vst [vmem:[#allocation8] sm:$0x1] %v573
    // Predicated region
    $region30: #{tpu_custom_call.1} parent=1 // pred_check
      _
    $region31: #{tpu_custom_call.1} parent=1 // pred_check_branch
      %576 = sbr.rel (0) target = $region33
    $region32: #{tpu_custom_call.1} parent=1 // pred_region
      %s578 = ssub.s32 16, 16
      %579 = vsyncadd [#allocation4], %s578
      %s581 = sshll.u32 [#allocation8], 4
      %s582 = int_to_ptr.vmem [resolvable:$true] %s581
      %584 = dma.vmem_to_hbm [thread:$0]  %s582, 16, %s4, [#allocation4]
    $region33: #{tpu_custom_call.1} parent=1 // pred_fallthru
      _
    // Predicated region
    $region34: #{tpu_custom_call.1} parent=1 // pred_check
      _
    $region35: #{tpu_custom_call.1} parent=1 // pred_check_branch
      %586 = sbr.rel (0) target = $region37
    $region36: #{tpu_custom_call.1} parent=1 // pred_region
      %587 = dma.done [#allocation4], 16
    $region37: #{tpu_custom_call.1} parent=1 // pred_fallthru
      _
    %588 = vsyncpa [#allocation3], 1
    %589 = vsyncpa [#allocation6], 1
    %590 = vsyncpa [#allocation4], 1

// kernel: tpu_custom_call.1
$region0: #{tpu_custom_call.1}
  #allocation0 [shape = 'u32[]', space=smem, size = 0x4, offset = 0x4, fixed_abs, tag = 'smem constant byte address 0x4 - core index']
  #allocation1 [shape = 'u32[144,128]{1,0:T(1,128)}', space=vmem, size = 0x12000, scoped, tag = 'internal scratch']
  %s0 = inlined_call_operand.hbm [shape: f32[1,512], index: 0, kind: input, shape index: {}]
  %s1 = inlined_call_operand.hbm [shape: bf16[512,128], index: 1, kind: input, shape index: {}]
  %s2 = inlined_call_operand.vmem [shape: f32[1,128], index: 2, kind: input, shape index: {}]
  %s3 = inlined_call_operand.hbm [shape: bf16[128,128], index: 3, kind: input, shape index: {}]
  %s4 = inlined_call_operand.hbm [shape: f32[1,128], index: 4, kind: output, shape index: {}]
  %s5 = sld [smem:[#allocation0]]
  $region38: #{tpu_custom_call.1} parent=0
    _
  %s7 = ssub.s32 1, %s5
  %s8 = scalar_select 0, %s7, %s5
  $region1: #{tpu_custom_call.1} parent=0
    #allocation2 [shape = 'u8[2048]{0}', space=vmem, size = 0x800, scoped, tag = 'input window, operand 0, single buffered']
    #allocation3 [shape = 's32[1]{0}', space=sflag, size = 0x4, scoped, tag = 'scoped memory for tpu_custom_call.1']
    #allocation4 [shape = 's32[1]{0}', space=sflag, size = 0x4, scoped, tag = 'scoped memory for tpu_custom_call.1']
    #allocation5 [shape = 'u8[131072]{0}', space=vmem, size = 0x20000, scoped, tag = 'input window, operand 1, single buffered']
    #allocation6 [shape = 's32[1]{0}', space=sflag, size = 0x4, scoped, tag = 'scoped memory for tpu_custom_call.1']
    #allocation7 [shape = 'u8[32768]{0}', space=vmem, size = 0x8000, scoped, tag = 'input window, operand 3, single buffered']
    #allocation8 [shape = 'u8[512]{0}', space=vmem, size = 0x400, scoped, tag = 'output window, operand 0, single buffered']
    %9 = vsyncpa [#allocation3], 0
    %10 = vsyncpa [#allocation6], 0
    %11 = vsyncpa [#allocation4], 0
    // Predicated region
    $region2: #{tpu_custom_call.1} parent=1 // pred_check
      _
    $region3: #{tpu_custom_call.1} parent=1 // pred_check_branch
      %13 = sbr.rel (0) target = $region5
    $region4: #{tpu_custom_call.1} parent=1 // pred_region
      %s15 = ssub.s32 64, 64
      %16 = vsyncadd [#allocation3], %s15
      %s18 = sshll.u32 [#allocation2], 4
      %s19 = int_to_ptr.vmem [resolvable:$true] %s18
      %21 = dma.hbm_to_vmem [thread:$0]  %s0, 64, %s19, [#allocation3]
    $region5: #{tpu_custom_call.1} parent=1 // pred_fallthru
      _
    // Predicated region
    $region6: #{tpu_custom_call.1} parent=1 // pred_check
      _
    $region7: #{tpu_custom_call.1} parent=1 // pred_check_branch
      %23 = sbr.rel (0) target = $region9
    $region8: #{tpu_custom_call.1} parent=1 // pred_region
      %s25 = ssub.s32 4096, 4096
      %26 = vsyncadd [#allocation6], %s25
      %s27 = sshll.u32 [#allocation5], 4
      %s28 = int_to_ptr.vmem [resolvable:$true] %s27
      %33 = dma.hbm_to_vmem [thread:$0]  %s1, 4096, %s28, [#allocation6], 64, 64, 4
    $region9: #{tpu_custom_call.1} parent=1 // pred_fallthru
      _
    // Predicated region
    $region10: #{tpu_custom_call.1} parent=1 // pred_check
      _
    $region11: #{tpu_custom_call.1} parent=1 // pred_check_branch
      %35 = sbr.rel (0) target = $region13
    $region12: #{tpu_custom_call.1} parent=1 // pred_region
      _
    $region13: #{tpu_custom_call.1} parent=1 // pred_fallthru
      _
    // Predicated region
    $region14: #{tpu_custom_call.1} parent=1 // pred_check
      _
    $region15: #{tpu_custom_call.1} parent=1 // pred_check_branch
      %37 = sbr.rel (0) target = $region17
    $region16: #{tpu_custom_call.1} parent=1 // pred_region
      %s39 = ssub.s32 1024, 1024
      %40 = vsyncadd [#allocation6], %s39
      %s41 = sshll.u32 [#allocation7], 4
      %s42 = int_to_ptr.vmem [resolvable:$true] %s41
      %47 = dma.hbm_to_vmem [thread:$0]  %s3, 1024, %s42, [#allocation6], 64, 64, 4
    $region17: #{tpu_custom_call.1} parent=1 // pred_fallthru
      _
    // Predicated region
    $region18: #{tpu_custom_call.1} parent=1 // pred_check
      _
    $region19: #{tpu_custom_call.1} parent=1 // pred_check_branch
      %49 = sbr.rel (0) target = $region21
    $region20: #{tpu_custom_call.1} parent=1 // pred_region
      %50 = dma.done [#allocation3], 64
    $region21: #{tpu_custom_call.1} parent=1 // pred_fallthru
      _
    // Predicated region
    $region22: #{tpu_custom_call.1} parent=1 // pred_check
      _
    $region23: #{tpu_custom_call.1} parent=1 // pred_check_branch
      %52 = sbr.rel (0) target = $region25
    $region24: #{tpu_custom_call.1} parent=1 // pred_region
      %53 = dma.done [#allocation6], 4096
    $region25: #{tpu_custom_call.1} parent=1 // pred_fallthru
      _
    // Predicated region
    $region26: #{tpu_custom_call.1} parent=1 // pred_check
      _
    $region27: #{tpu_custom_call.1} parent=1 // pred_check_branch
      %55 = sbr.rel (0) target = $region29
    $region28: #{tpu_custom_call.1} parent=1 // pred_region
      %56 = dma.done [#allocation6], 1024
    $region29: #{tpu_custom_call.1} parent=1 // pred_fallthru
      _
    %v58 = vld [vmem:[#allocation2] sm:$0xf]
    %v60 = vlaneseq
    %v61 = vshrl.u32 %v60, 7
    %v62 = vsub.s32 0, %v61
    %v63 = vrot.slane %v58, %v62
    %v64 = vlaneseq
    %v65 = vshrl.u32 %v64, 7
    %v66 = vsub.s32 1, %v65
    %v67 = vrot.slane %v58, %v66
    %v68 = vlaneseq
    %v69 = vshrl.u32 %v68, 7
    %v70 = vsub.s32 2, %v69
    %v71 = vrot.slane %v58, %v70
    %v72 = vlaneseq
    %v73 = vshrl.u32 %v72, 7
    %v74 = vsub.s32 3, %v73
    %v75 = vrot.slane %v58, %v74
    %v80 = vpack.c.bf16 %v63, %v63
    %v81 = vpack.c.bf16 %v67, %v67
    %v82 = vpack.c.bf16 %v71, %v71
    %v83 = vpack.c.bf16 %v75, %v75
    %v84 = vld [vmem:[#allocation5] sm:$0xf]
    %v85 = vld [vmem:[#allocation5 + $0x4] sm:$0xf]
    %v86 = vld [vmem:[#allocation5 + $0x8] sm:$0xf]
    %v87 = vld [vmem:[#allocation5 + $0xc] sm:$0xf]
    %v88 = vld [vmem:[#allocation5 + $0x10] sm:$0xf]
    %v89 = vld [vmem:[#allocation5 + $0x14] sm:$0xf]
    %v90 = vld [vmem:[#allocation5 + $0x18] sm:$0xf]
    %v91 = vld [vmem:[#allocation5 + $0x1c] sm:$0xf]
    %v92 = vld [vmem:[#allocation5 + $0x20] sm:$0xf]
    %v93 = vld [vmem:[#allocation5 + $0x24] sm:$0xf]
    %v94 = vld [vmem:[#allocation5 + $0x28] sm:$0xf]
    %v95 = vld [vmem:[#allocation5 + $0x2c] sm:$0xf]
    %v96 = vld [vmem:[#allocation5 + $0x30] sm:$0xf]
    %v97 = vld [vmem:[#allocation5 + $0x34] sm:$0xf]
    %v98 = vld [vmem:[#allocation5 + $0x38] sm:$0xf]
    %v99 = vld [vmem:[#allocation5 + $0x3c] sm:$0xf]
    %v100 = vld [vmem:[#allocation5 + $0x40] sm:$0xf]
    %v101 = vld [vmem:[#allocation5 + $0x44] sm:$0xf]
    %v102 = vld [vmem:[#allocation5 + $0x48] sm:$0xf]
    %v103 = vld [vmem:[#allocation5 + $0x4c] sm:$0xf]
    %v104 = vld [vmem:[#allocation5 + $0x50] sm:$0xf]
    %v105 = vld [vmem:[#allocation5 + $0x54] sm:$0xf]
    %v106 = vld [vmem:[#allocation5 + $0x58] sm:$0xf]
    %v107 = vld [vmem:[#allocation5 + $0x5c] sm:$0xf]
    %v108 = vld [vmem:[#allocation5 + $0x60] sm:$0xf]
    %v109 = vld [vmem:[#allocation5 + $0x64] sm:$0xf]
    %v110 = vld [vmem:[#allocation5 + $0x68] sm:$0xf]
    %v111 = vld [vmem:[#allocation5 + $0x6c] sm:$0xf]
    %v112 = vld [vmem:[#allocation5 + $0x70] sm:$0xf]
    %v113 = vld [vmem:[#allocation5 + $0x74] sm:$0xf]
    %v114 = vld [vmem:[#allocation5 + $0x78] sm:$0xf]
    %v115 = vld [vmem:[#allocation5 + $0x7c] sm:$0xf]
    %v116 = vld [vmem:[#allocation5 + $0x80] sm:$0xf]
    %v117 = vld [vmem:[#allocation5 + $0x84] sm:$0xf]
    %v118 = vld [vmem:[#allocation5 + $0x88] sm:$0xf]
    %v119 = vld [vmem:[#allocation5 + $0x8c] sm:$0xf]
    %v120 = vld [vmem:[#allocation5 + $0x90] sm:$0xf]
    %v121 = vld [vmem:[#allocation5 + $0x94] sm:$0xf]
    %v122 = vld [vmem:[#allocation5 + $0x98] sm:$0xf]
    %v123 = vld [vmem:[#allocation5 + $0x9c] sm:$0xf]
    %v124 = vld [vmem:[#allocation5 + $0xa0] sm:$0xf]
    %v125 = vld [vmem:[#allocation5 + $0xa4] sm:$0xf]
    %v126 = vld [vmem:[#allocation5 + $0xa8] sm:$0xf]
    %v127 = vld [vmem:[#allocation5 + $0xac] sm:$0xf]
    %v128 = vld [vmem:[#allocation5 + $0xb0] sm:$0xf]
    %v129 = vld [vmem:[#allocation5 + $0xb4] sm:$0xf]
    %v130 = vld [vmem:[#allocation5 + $0xb8] sm:$0xf]
    %v131 = vld [vmem:[#allocation5 + $0xbc] sm:$0xf]
    %v132 = vld [vmem:[#allocation5 + $0xc0] sm:$0xf]
    %v133 = vld [vmem:[#allocation5 + $0xc4] sm:$0xf]
    %v134 = vld [vmem:[#allocation5 + $0xc8] sm:$0xf]
    %v135 = vld [vmem:[#allocation5 + $0xcc] sm:$0xf]
    %v136 = vld [vmem:[#allocation5 + $0xd0] sm:$0xf]
    %v137 = vld [vmem:[#allocation5 + $0xd4] sm:$0xf]
    %v138 = vld [vmem:[#allocation5 + $0xd8] sm:$0xf]
    %v139 = vld [vmem:[#allocation5 + $0xdc] sm:$0xf]
    %v140 = vld [vmem:[#allocation5 + $0xe0] sm:$0xf]
    %v141 = vld [vmem:[#allocation5 + $0xe4] sm:$0xf]
    %v142 = vld [vmem:[#allocation5 + $0xe8] sm:$0xf]
    %v143 = vld [vmem:[#allocation5 + $0xec] sm:$0xf]
    %v144 = vld [vmem:[#allocation5 + $0xf0] sm:$0xf]
    %v145 = vld [vmem:[#allocation5 + $0xf4] sm:$0xf]
    %v146 = vld [vmem:[#allocation5 + $0xf8] sm:$0xf]
    %v147 = vld [vmem:[#allocation5 + $0xfc] sm:$0xf]
    %v148 = vld [vmem:[%s2] sm:$0x1]
    %v213 = vunpack.c.l.b16 %v84
    %v214 = vunpack.c.l.b16 %v85
    %v215 = vunpack.c.l.b16 %v86
    %v216 = vunpack.c.l.b16 %v87
    %v217 = vunpack.c.l.b16 %v88
    %v218 = vunpack.c.l.b16 %v89
    %v219 = vunpack.c.l.b16 %v90
    %v220 = vunpack.c.l.b16 %v91
    %v221 = vunpack.c.l.b16 %v92
    %v222 = vunpack.c.l.b16 %v93
    %v223 = vunpack.c.l.b16 %v94
    %v224 = vunpack.c.l.b16 %v95
    %v225 = vunpack.c.l.b16 %v96
    %v226 = vunpack.c.l.b16 %v97
    %v227 = vunpack.c.l.b16 %v98
    %v228 = vunpack.c.l.b16 %v99
    %v229 = vunpack.c.l.b16 %v100
    %v230 = vunpack.c.l.b16 %v101
    %v231 = vunpack.c.l.b16 %v102
    %v232 = vunpack.c.l.b16 %v103
    %v233 = vunpack.c.l.b16 %v104
    %v234 = vunpack.c.l.b16 %v105
    %v235 = vunpack.c.l.b16 %v106
    %v236 = vunpack.c.l.b16 %v107
    %v237 = vunpack.c.l.b16 %v108
    %v238 = vunpack.c.l.b16 %v109
    %v239 = vunpack.c.l.b16 %v110
    %v240 = vunpack.c.l.b16 %v111
    %v241 = vunpack.c.l.b16 %v112
    %v242 = vunpack.c.l.b16 %v113
    %v243 = vunpack.c.l.b16 %v114
    %v244 = vunpack.c.l.b16 %v115
    %v245 = vunpack.c.l.b16 %v116
    %v246 = vunpack.c.l.b16 %v117
    %v247 = vunpack.c.l.b16 %v118
    %v248 = vunpack.c.l.b16 %v119
    %v249 = vunpack.c.l.b16 %v120
    %v250 = vunpack.c.l.b16 %v121
    %v251 = vunpack.c.l.b16 %v122
    %v252 = vunpack.c.l.b16 %v123
    %v253 = vunpack.c.l.b16 %v124
    %v254 = vunpack.c.l.b16 %v125
    %v255 = vunpack.c.l.b16 %v126
    %v256 = vunpack.c.l.b16 %v127
    %v257 = vunpack.c.l.b16 %v128
    %v258 = vunpack.c.l.b16 %v129
    %v259 = vunpack.c.l.b16 %v130
    %v260 = vunpack.c.l.b16 %v131
    %v261 = vunpack.c.l.b16 %v132
    %v262 = vunpack.c.l.b16 %v133
    %v263 = vunpack.c.l.b16 %v134
    %v264 = vunpack.c.l.b16 %v135
    %v265 = vunpack.c.l.b16 %v136
    %v266 = vunpack.c.l.b16 %v137
    %v267 = vunpack.c.l.b16 %v138
    %v268 = vunpack.c.l.b16 %v139
    %v269 = vunpack.c.l.b16 %v140
    %v270 = vunpack.c.l.b16 %v141
    %v271 = vunpack.c.l.b16 %v142
    %v272 = vunpack.c.l.b16 %v143
    %v273 = vunpack.c.l.b16 %v144
    %v274 = vunpack.c.l.b16 %v145
    %v275 = vunpack.c.l.b16 %v146
    %v276 = vunpack.c.l.b16 %v147
    %v277 = vpack.c.b16 %v214, %v213
    %v278 = vpack.c.b16 %v216, %v215
    %v279 = vpack.c.b16 %v218, %v217
    %v280 = vpack.c.b16 %v220, %v219
    %v281 = vpack.c.b16 %v222, %v221
    %v282 = vpack.c.b16 %v224, %v223
    %v283 = vpack.c.b16 %v226, %v225
    %v284 = vpack.c.b16 %v228, %v227
    %v285 = vpack.c.b16 %v230, %v229
    %v286 = vpack.c.b16 %v232, %v231
    %v287 = vpack.c.b16 %v234, %v233
    %v288 = vpack.c.b16 %v236, %v235
    %v289 = vpack.c.b16 %v238, %v237
    %v290 = vpack.c.b16 %v240, %v239
    %v291 = vpack.c.b16 %v242, %v241
    %v292 = vpack.c.b16 %v244, %v243
    %v293 = vpack.c.b16 %v246, %v245
    %v294 = vpack.c.b16 %v248, %v247
    %v295 = vpack.c.b16 %v250, %v249
    %v296 = vpack.c.b16 %v252, %v251
    %v297 = vpack.c.b16 %v254, %v253
    %v298 = vpack.c.b16 %v256, %v255
    %v299 = vpack.c.b16 %v258, %v257
    %v300 = vpack.c.b16 %v260, %v259
    %v301 = vpack.c.b16 %v262, %v261
    %v302 = vpack.c.b16 %v264, %v263
    %v303 = vpack.c.b16 %v266, %v265
    %v304 = vpack.c.b16 %v268, %v267
    %v305 = vpack.c.b16 %v270, %v269
    %v306 = vpack.c.b16 %v272, %v271
    %v307 = vpack.c.b16 %v274, %v273
    %v308 = vpack.c.b16 %v276, %v275
    %341 = vmatprep.subr.bf16.mxu0 0
    %342 = vmatpush1.bf16.msra.mxu0 %v277
    %343 = vmatprep.subr.bf16.mxu0 0
    %344 = vmatpush1.bf16.msra.mxu0 %v278
    %345 = vmatprep.subr.bf16.mxu0 0
    %346 = vmatpush1.bf16.msra.mxu0 %v279
    %347 = vmatprep.subr.bf16.mxu0 0
    %348 = vmatpush1.bf16.msra.mxu0 %v280
    %349 = vmatprep.subr.bf16.mxu0 0
    %350 = vmatpush1.bf16.msra.mxu0 %v281
    %351 = vmatprep.subr.bf16.mxu0 0
    %352 = vmatpush1.bf16.msra.mxu0 %v282
    %353 = vmatprep.subr.bf16.mxu0 0
    %354 = vmatpush1.bf16.msra.mxu0 %v283
    %355 = vmatprep.subr.bf16.mxu0 0
    %356 = vmatpush1.bf16.msra.mxu0 %v284
    %357 = vmatprep.subr.bf16.mxu0 0
    %358 = vmatpush1.bf16.msra.mxu0 %v285
    %359 = vmatprep.subr.bf16.mxu0 0
    %360 = vmatpush1.bf16.msra.mxu0 %v286
    %361 = vmatprep.subr.bf16.mxu0 0
    %362 = vmatpush1.bf16.msra.mxu0 %v287
    %363 = vmatprep.subr.bf16.mxu0 0
    %364 = vmatpush1.bf16.msra.mxu0 %v288
    %365 = vmatprep.subr.bf16.mxu0 0
    %366 = vmatpush1.bf16.msra.mxu0 %v289
    %367 = vmatprep.subr.bf16.mxu0 0
    %368 = vmatpush1.bf16.msra.mxu0 %v290
    %369 = vmatprep.subr.bf16.mxu0 0
    %370 = vmatpush1.bf16.msra.mxu0 %v291
    %371 = vmatprep.subr.bf16.mxu0 0
    %372 = vmatpush1.bf16.msra.mxu0 %v292
    %373 = vmatprep.mubr.bf16.mxu0 %v81
    %374 = vmatmul.mubr.bf16.gmra.mrb[0].mxu0 %v80
    %v375 = vpop.f32.mrb[0].mxu0
    %v376 = vadd.f32 %v148, %v375
    %v377 = vpop.f32.mrb[0].mxu0
    %v378 = vpop.f32.mrb[0].mxu0
    %v379 = vpop.f32.mrb[0].mxu0
    %380 = vdwg.mxu0
    %381 = vmatprep.subr.bf16.mxu0 0
    %382 = vmatpush1.bf16.msra.mxu0 %v293
    %383 = vmatprep.subr.bf16.mxu0 0
    %384 = vmatpush1.bf16.msra.mxu0 %v294
    %385 = vmatprep.subr.bf16.mxu0 0
    %386 = vmatpush1.bf16.msra.mxu0 %v295
    %387 = vmatprep.subr.bf16.mxu0 0
    %388 = vmatpush1.bf16.msra.mxu0 %v296
    %389 = vmatprep.subr.bf16.mxu0 0
    %390 = vmatpush1.bf16.msra.mxu0 %v297
    %391 = vmatprep.subr.bf16.mxu0 0
    %392 = vmatpush1.bf16.msra.mxu0 %v298
    %393 = vmatprep.subr.bf16.mxu0 0
    %394 = vmatpush1.bf16.msra.mxu0 %v299
    %395 = vmatprep.subr.bf16.mxu0 0
    %396 = vmatpush1.bf16.msra.mxu0 %v300
    %397 = vmatprep.subr.bf16.mxu0 0
    %398 = vmatpush1.bf16.msra.mxu0 %v301
    %399 = vmatprep.subr.bf16.mxu0 0
    %400 = vmatpush1.bf16.msra.mxu0 %v302
    %401 = vmatprep.subr.bf16.mxu0 0
    %402 = vmatpush1.bf16.msra.mxu0 %v303
    %403 = vmatprep.subr.bf16.mxu0 0
    %404 = vmatpush1.bf16.msra.mxu0 %v304
    %405 = vmatprep.subr.bf16.mxu0 0
    %406 = vmatpush1.bf16.msra.mxu0 %v305
    %407 = vmatprep.subr.bf16.mxu0 0
    %408 = vmatpush1.bf16.msra.mxu0 %v306
    %409 = vmatprep.subr.bf16.mxu0 0
    %410 = vmatpush1.bf16.msra.mxu0 %v307
    %411 = vmatprep.subr.bf16.mxu0 0
    %412 = vmatpush1.bf16.msra.mxu0 %v308
    %413 = vmatprep.mubr.bf16.mxu0 %v83
    %414 = vmatmul.mubr.bf16.gmra.mrb[0].mxu0 %v82
    %v415 = vpop.f32.mrb[0].mxu0
    %v416 = vadd.f32 %v376, %v415
    %v417 = vpop.f32.mrb[0].mxu0
    %v418 = vpop.f32.mrb[0].mxu0
    %v419 = vpop.f32.mrb[0].mxu0
    %420 = vdwg.mxu0
    %v421 = vpack.c.bf16 %v416, %v416
    %v422 = vld [vmem:[#allocation7] sm:$0xf]
    %v423 = vld [vmem:[#allocation7 + $0x4] sm:$0xf]
    %v424 = vld [vmem:[#allocation7 + $0x8] sm:$0xf]
    %v425 = vld [vmem:[#allocation7 + $0xc] sm:$0xf]
    %v426 = vld [vmem:[#allocation7 + $0x10] sm:$0xf]
    %v427 = vld [vmem:[#allocation7 + $0x14] sm:$0xf]
    %v428 = vld [vmem:[#allocation7 + $0x18] sm:$0xf]
    %v429 = vld [vmem:[#allocation7 + $0x1c] sm:$0xf]
    %v430 = vld [vmem:[#allocation7 + $0x20] sm:$0xf]
    %v431 = vld [vmem:[#allocation7 + $0x24] sm:$0xf]
    %v432 = vld [vmem:[#allocation7 + $0x28] sm:$0xf]
    %v433 = vld [vmem:[#allocation7 + $0x2c] sm:$0xf]
    %v434 = vld [vmem:[#allocation7 + $0x30] sm:$0xf]
    %v435 = vld [vmem:[#allocation7 + $0x34] sm:$0xf]
    %v436 = vld [vmem:[#allocation7 + $0x38] sm:$0xf]
    %v437 = vld [vmem:[#allocation7 + $0x3c] sm:$0xf]
    %v454 = vunpack.c.l.b16 %v422
    %v455 = vunpack.c.l.b16 %v423
    %v456 = vunpack.c.l.b16 %v424
    %v457 = vunpack.c.l.b16 %v425
    %v458 = vunpack.c.l.b16 %v426
    %v459 = vunpack.c.l.b16 %v427
    %v460 = vunpack.c.l.b16 %v428
    %v461 = vunpack.c.l.b16 %v429
    %v462 = vunpack.c.l.b16 %v430
    %v463 = vunpack.c.l.b16 %v431
    %v464 = vunpack.c.l.b16 %v432
    %v465 = vunpack.c.l.b16 %v433
    %v466 = vunpack.c.l.b16 %v434
    %v467 = vunpack.c.l.b16 %v435
    %v468 = vunpack.c.l.b16 %v436
    %v469 = vunpack.c.l.b16 %v437
    %v470 = vpack.c.b16 %v455, %v454
    %v471 = vpack.c.b16 %v457, %v456
    %v472 = vpack.c.b16 %v459, %v458
    %v473 = vpack.c.b16 %v461, %v460
    %v474 = vpack.c.b16 %v463, %v462
    %v475 = vpack.c.b16 %v465, %v464
    %v476 = vpack.c.b16 %v467, %v466
    %v477 = vpack.c.b16 %v469, %v468
    %486 = vmatprep.subr.bf16.mxu0 0
    %487 = vmatpush1.bf16.msra.mxu0 %v470
    %488 = vmatprep.subr.bf16.mxu0 0
    %489 = vmatpush1.bf16.msra.mxu0 %v471
    %490 = vmatprep.subr.bf16.mxu0 0
    %491 = vmatpush1.bf16.msra.mxu0 %v472
    %492 = vmatprep.subr.bf16.mxu0 0
    %493 = vmatpush1.bf16.msra.mxu0 %v473
    %494 = vmatprep.subr.bf16.mxu0 0
    %495 = vmatpush1.bf16.msra.mxu0 %v474
    %496 = vmatprep.subr.bf16.mxu0 0
    %497 = vmatpush1.bf16.msra.mxu0 %v475
    %498 = vmatprep.subr.bf16.mxu0 0
    %499 = vmatpush1.bf16.msra.mxu0 %v476
    %500 = vmatprep.subr.bf16.mxu0 0
    %501 = vmatpush1.bf16.msra.mxu0 %v477
    %502 = vmatprep.subr.bf16.mxu0 0
    %503 = vmatpush1.bf16.msra.mxu0 0
    %504 = vmatprep.subr.bf16.mxu0 0
    %505 = vmatpush1.bf16.msra.mxu0 0
    %506 = vmatprep.subr.bf16.mxu0 0
    %507 = vmatpush1.bf16.msra.mxu0 0
    %508 = vmatprep.subr.bf16.mxu0 0
    %509 = vmatpush1.bf16.msra.mxu0 0
    %510 = vmatprep.subr.bf16.mxu0 0
    %511 = vmatpush1.bf16.msra.mxu0 0
    %512 = vmatprep.subr.bf16.mxu0 0
    %513 = vmatpush1.bf16.msra.mxu0 0
    %514 = vmatprep.subr.bf16.mxu0 0
    %515 = vmatpush1.bf16.msra.mxu0 0
    %516 = vmatprep.subr.bf16.mxu0 0
    %517 = vmatpush1.bf16.msra.mxu0 0
    %518 = vmatprep.mubr.bf16.mxu0 0
    %519 = vmatmul.mubr.bf16.gmra.mrb[0].mxu0 %v421
    %v520 = vpop.f32.mrb[0].mxu0
    %v521 = vadd.f32 0.0, %v520
    %v522 = vpop.f32.mrb[0].mxu0
    %v523 = vpop.f32.mrb[0].mxu0
    %v524 = vpop.f32.mrb[0].mxu0
    %525 = vdwg.mxu0
    %v526 = vmul.f32 %v521, 0.125
    %v527 = vsub.f32 %v416, %v526
    %v528 = vmin.f32 %v527, 85.0
    %v529 = vmul.f32 %v528, 1.442695
    %v530 = vpow.pop %v529
    %v531 = vpack.c.bf16 %v530, %v530
    %532 = vmatprep.subr.bf16.mxu0 0
    %533 = vmatpush1.bf16.msra.mxu0 %v470
    %534 = vmatprep.subr.bf16.mxu0 0
    %535 = vmatpush1.bf16.msra.mxu0 %v471
    %536 = vmatprep.subr.bf16.mxu0 0
    %537 = vmatpush1.bf16.msra.mxu0 %v472
    %538 = vmatprep.subr.bf16.mxu0 0
    %539 = vmatpush1.bf16.msra.mxu0 %v473
    %540 = vmatprep.subr.bf16.mxu0 0
    %541 = vmatpush1.bf16.msra.mxu0 %v474
    %542 = vmatprep.subr.bf16.mxu0 0
    %543 = vmatpush1.bf16.msra.mxu0 %v475
    %544 = vmatprep.subr.bf16.mxu0 0
    %545 = vmatpush1.bf16.msra.mxu0 %v476
    %546 = vmatprep.subr.bf16.mxu0 0
    %547 = vmatpush1.bf16.msra.mxu0 %v477
    %548 = vmatprep.subr.bf16.mxu0 0
    %549 = vmatpush1.bf16.msra.mxu0 0
    %550 = vmatprep.subr.bf16.mxu0 0
    %551 = vmatpush1.bf16.msra.mxu0 0
    %552 = vmatprep.subr.bf16.mxu0 0
    %553 = vmatpush1.bf16.msra.mxu0 0
    %554 = vmatprep.subr.bf16.mxu0 0
    %555 = vmatpush1.bf16.msra.mxu0 0
    %556 = vmatprep.subr.bf16.mxu0 0
    %557 = vmatpush1.bf16.msra.mxu0 0
    %558 = vmatprep.subr.bf16.mxu0 0
    %559 = vmatpush1.bf16.msra.mxu0 0
    %560 = vmatprep.subr.bf16.mxu0 0
    %561 = vmatpush1.bf16.msra.mxu0 0
    %562 = vmatprep.subr.bf16.mxu0 0
    %563 = vmatpush1.bf16.msra.mxu0 0
    %564 = vmatprep.mubr.bf16.mxu0 0
    %565 = vmatmul.mubr.bf16.gmra.mrb[0].mxu0 %v531
    %v566 = vpop.f32.mrb[0].mxu0
    %v567 = vadd.f32 0.0, %v566
    %v568 = vpop.f32.mrb[0].mxu0
    %v569 = vpop.f32.mrb[0].mxu0
    %v570 = vpop.f32.mrb[0].mxu0
    %571 = vdwg.mxu0
    %v572 = vrcp.pop %v567
    %v573 = vmul.f32 %v530, %v572
    %574 = vst [vmem:[#allocation8] sm:$0x1] %v573
    // Predicated region
    $region30: #{tpu_custom_call.1} parent=1 // pred_check
      _
    $region31: #{tpu_custom_call.1} parent=1 // pred_check_branch
      %576 = sbr.rel (0) target = $region33
    $region32: #{tpu_custom_call.1} parent=1 // pred_region
      %s578 = ssub.s32 16, 16
      %579 = vsyncadd [#allocation4], %s578
      %s581 = sshll.u32 [#allocation8], 4
      %s582 = int_to_ptr.vmem [resolvable:$true] %s581
      %584 = dma.vmem_to_hbm [thread:$0]  %s582, 16, %s4, [#allocation4]
    $region33: #{tpu_custom_call.1} parent=1 // pred_fallthru
      _
    // Predicated region
    $region34: #{tpu_custom_call.1} parent=1 // pred_check
      _
    $region35: #{tpu_custom_call.1} parent=1 // pred_check_branch
      %586 = sbr.rel (0) target = $region37
    $region36: #{tpu_custom_call.1} parent=1 // pred_region
      %587 = dma.done [#allocation4], 16
    $region37: #{tpu_custom_call.1} parent=1 // pred_fallthru
      _
    %588 = vsyncpa [#allocation3], 1
    %589 = vsyncpa [#allocation6], 1
    %590 = vsyncpa [#allocation4], 1

</llo_original>
